<compile_context>
chip_gen: v6e
topology: v6e:2x2x1
jax: 0.10.0
libtpu: 0.0.40
codegen_flags: <defaults>
</compile_context>

<pallas_src>
import functools

import jax
import jax.numpy as jnp
from jax.experimental import pallas as pl
from jax.experimental.pallas import tpu as pltpu


# ------------------------------ helpers ------------------------------------ #
def _round_up(x, m):
    return (x + m - 1) // m * m


def _block_diag(mats):
    """(nb, r, c) -> (nb*r, nb*c) block-diagonal matrix."""
    nb, r, c = mats.shape
    eye = jnp.eye(nb, dtype=mats.dtype)
    return (mats[:, :, None, :] * eye[:, None, :, None]).reshape(nb * r, nb * c)


# ----------------------------- Pallas kernel -------------------------------- #
def _nll_kernel(int_ref, cond_ref, z_ref,
                w1s_ref, w1c_ref, b1_ref, w2_ref, b2_ref, w3_ref, b3_ref,
                loss_ref, *, batch_global, mm_dtype):
    """One batch tile: fused scaling nets of all coupling blocks + loss partial."""
    nb, bt, _ = int_ref.shape

    cond = cond_ref[...]                                        # (Bt, 1) f32
    # fc1 bias + condition rank-1 update, once per tile (concatenated (1, 3W) row).
    h1 = cond * w1c_ref[...] + b1_ref[...]                      # (Bt, 3W) f32
    # "scatter" fc1: contracts the FULL intermediates tile (unused upper-half rows of
    # the weights are zero); each block's result lands pre-concatenated along lanes.
    for i in range(nb):                                         # static unroll (nb matmuls)
        h1 = h1 + jnp.dot(int_ref[i].astype(mm_dtype), w1s_ref[i],
                          preferred_element_type=jnp.float32)
    h1 = jnp.maximum(h1, 0.0)

    # fc2 / fc3 fused across blocks via block-diagonal weights:
    # ONE matmul, ONE relu, ONE matmul, ONE tanh, ONE lane-sum.
    h2 = jnp.maximum(
        jnp.dot(h1.astype(mm_dtype), w2_ref[...],
                preferred_element_type=jnp.float32) + b2_ref[...],
        0.0)                                                    # (Bt, 3W)
    o = jnp.dot(h2.astype(mm_dtype), w3_ref[...],
                preferred_element_type=jnp.float32) + b3_ref[...]   # (Bt, 3*out)
    # log(exp(tanh(o))) == tanh(o): exp/log round-trip cancelled exactly.
    logdet = jnp.tanh(o).sum(axis=1, keepdims=True)             # (Bt, 1)

    z = z_ref[...].astype(jnp.float32)
    transformed = 0.5 * (z * z).sum(axis=1, keepdims=True)      # (Bt, 1)
    diff = transformed - logdet

    # Mask padded / ragged rows; mean divisor is the GLOBAL batch size.
    row = pl.program_id(0) * bt + jax.lax.broadcasted_iota(jnp.int32, (bt, 1), 0)
    diff = jnp.where(row < batch_global, diff, 0.0)

    tile_sum = jnp.sum(diff, axis=0, keepdims=True) * (1.0 / batch_global)  # (1, 1)
    # Lane/sublane-dense partial-sum block -> plain unmasked store.
    loss_ref[...] = jnp.broadcast_to(tile_sum[None], loss_ref.shape)


# ------------------------------- wrapper ------------------------------------ #
def nll_loss_pallas(intermediates, z, condition, params, *,
                    max_tile_rows=2048, mm_dtype=jnp.float32):
    """
    intermediates: [blocks, B, data_dim]  (stacked list from RealNVP.forward, FULL dim)
    z:             [B, data_dim]
    condition:     [B]   (scalar label per sample; condition_size == 1)
    params: stacked scaling-net weights:
        w1 [blocks, D//2+1, W], b1 [blocks, 1, W]
        w2 [blocks, W, W],      b2 [blocks, 1, W]
        w3 [blocks, W, out],    b3 [blocks, 1, out]
    max_tile_rows: batch tile size cap (2048 default; ~8192 reasonable on v7x).
    mm_dtype: matmul operand dtype (jnp.bfloat16 for bf16-native MXUs on v6e/v7x).
    """
    nb, batch, data_dim = intermediates.shape
    d_tilde = data_dim // 2
    width = params["w2"].shape[-1]
    out_dim = params["w3"].shape[-1]

    # ---- weight packing (tiny; in real training pre-pack once outside the step) ----
    w1_low = params["w1"][:, :d_tilde, :]                               # (nb, D/2, W)
    # Explicit zero rows for the unused upper half (exactness requirement).
    w1_pad = jnp.concatenate(
        [w1_low, jnp.zeros((nb, data_dim - d_tilde, width), w1_low.dtype)], axis=1)
    eye = jnp.eye(nb, dtype=w1_pad.dtype)
    w1_scatter = (w1_pad[:, :, None, :] * eye[:, None, :, None]
                  ).reshape(nb, data_dim, nb * width)                   # (nb, D, 3W)
    w1_cond = params["w1"][:, d_tilde, :].reshape(1, nb * width)        # (1, 3W)
    b1 = params["b1"][:, 0, :].reshape(1, nb * width)
    w2 = _block_diag(params["w2"])                                      # (3W, 3W)
    b2 = params["b2"][:, 0, :].reshape(1, nb * width)
    w3 = _block_diag(params["w3"])                                      # (3W, 3*out)
    b3 = params["b3"][:, 0, :].reshape(1, nb * out_dim)

    # MXU operands in mm_dtype; bias / condition row stay f32 (VPU add path).
    w1_scatter = w1_scatter.astype(mm_dtype)
    w2 = w2.astype(mm_dtype)
    w3 = w3.astype(mm_dtype)
    w1_cond = w1_cond.astype(jnp.float32)
    b1 = b1.astype(jnp.float32)
    b2 = b2.astype(jnp.float32)
    b3 = b3.astype(jnp.float32)

    # ---- batch tiling -----------------------------------------------------------
    bt = min(max_tile_rows, _round_up(batch, 8))
    num_tiles = (batch + bt - 1) // bt
    b_pad = num_tiles * bt

    cond = condition.astype(jnp.float32).reshape(batch, 1)
    if b_pad != batch:
        pad = b_pad - batch
        intermediates = jnp.pad(intermediates, ((0, 0), (0, pad), (0, 0)))
        z = jnp.pad(z, ((0, pad), (0, 0)))
        cond = jnp.pad(cond, ((0, pad), (0, 0)))

    kernel = functools.partial(_nll_kernel, batch_global=batch, mm_dtype=mm_dtype)

    grid_spec = pltpu.PrefetchScalarGridSpec(
        num_scalar_prefetch=0,
        grid=(num_tiles,),
        in_specs=[
            # streamed per batch tile (auto double-buffered):
            pl.BlockSpec((nb, bt, data_dim), lambda b: (0, b, 0)),          # intermediates
            pl.BlockSpec((bt, 1), lambda b: (b, 0)),                        # condition
            pl.BlockSpec((bt, data_dim), lambda b: (b, 0)),                 # z
            # weights: constant block index -> DMA'd once, VMEM-resident:
            pl.BlockSpec((nb, data_dim, nb * width), lambda b: (0, 0, 0)),  # fc1 scatter
            pl.BlockSpec((1, nb * width), lambda b: (0, 0)),                # fc1 cond row
            pl.BlockSpec((1, nb * width), lambda b: (0, 0)),                # b1
            pl.BlockSpec((nb * width, nb * width), lambda b: (0, 0)),       # fc2 block-diag
            pl.BlockSpec((1, nb * width), lambda b: (0, 0)),                # b2
            pl.BlockSpec((nb * width, nb * out_dim), lambda b: (0, 0)),     # fc3 block-diag
            pl.BlockSpec((1, nb * out_dim), lambda b: (0, 0)),              # b3
        ],
        out_specs=pl.BlockSpec((1, 8, 128), lambda b: (b, 0, 0)),
    )

    partial = pl.pallas_call(
        kernel,
        out_shape=jax.ShapeDtypeStruct((num_tiles, 8, 128), jnp.float32),
        grid_spec=grid_spec,
        compiler_params=pltpu.CompilerParams(
            dimension_semantics=("parallel",)),       # v7x: shard batch tiles on 2 TCs
    )(intermediates, cond, z, w1_scatter, w1_cond, b1, w2, b2, w3, b3)

    # Each tile already divided by the global batch; reduce partial sums outside.
    return partial[:, 0, 0].sum()


# --------------------------- pure-JAX reference ------------------------------ #
def nll_loss_ref(intermediates, z, condition, params):
    nb, B, data_dim = intermediates.shape
    d_tilde = data_dim // 2
    log_det = jnp.zeros((B,), jnp.float32)
    for i in range(nb):
        lower = intermediates[i][:, :d_tilde]
        x = jnp.concatenate([lower, condition[:, None].astype(jnp.float32)], axis=1)
        h1 = jax.nn.relu(x @ params["w1"][i] + params["b1"][i][0])
        h2 = jax.nn.relu(h1 @ params["w2"][i] + params["b2"][i][0])
        scale = jnp.exp(jnp.tanh(h2 @ params["w3"][i] + params["b3"][i][0]))
        log_det = log_det + jnp.log(scale).sum(axis=1)
    transformed = (z ** 2).sum(axis=1) / 2.0
    return jnp.mean(transformed - log_det)


# ---------------------------------- main ------------------------------------- #
if __name__ == "__main__":
    # Small shapes consistent with the RealNVP module.
    batch = 8
    data_dim = 8
    hidden = 32          # width of scaling subnets
    blocks = 3
    condition_size = 1   # condition.unsqueeze(1) -> 1 extra input feature

    d_tilde = data_dim // 2
    out_dim = data_dim - d_tilde
    d_in = d_tilde + condition_size

    key = jax.random.PRNGKey(0)
    keys = jax.random.split(key, 12)

    def init(k, shape, fan_in):
        bound = 1.0 / jnp.sqrt(fan_in)
        return jax.random.uniform(k, shape, jnp.float32, -bound, bound)

    params = {
        "w1": init(keys[0], (blocks, d_in, hidden), d_in),
        "b1": init(keys[1], (blocks, 1, hidden), d_in),
        "w2": init(keys[2], (blocks, hidden, hidden), hidden),
        "b2": init(keys[3], (blocks, 1, hidden), hidden),
        "w3": init(keys[4], (blocks, hidden, out_dim), hidden),
        "b3": init(keys[5], (blocks, 1, out_dim), hidden),
    }

    # Synthetic forward-pass artifacts: intermediates (one per coupling layer), z, condition.
    intermediates = jax.random.normal(keys[6], (blocks, batch, data_dim), jnp.float32)
    z = jax.random.normal(keys[7], (batch, data_dim), jnp.float32)
    condition = jax.random.randint(keys[8], (batch,), 0, 4).astype(jnp.float32)

    # 1) f32 path, single batch tile.
    loss = jax.block_until_ready(
        jax.jit(nll_loss_pallas)(intermediates, z, condition, params))
    ref = nll_loss_ref(intermediates, z, condition, params)
    assert jnp.allclose(loss, ref, rtol=1e-5, atol=1e-4), (loss, ref)

    # 2) ragged batch + multi-tile grid (checks global-mean divisor + row mask).
    batch2 = 13
    inter2 = jax.random.normal(keys[9], (blocks, batch2, data_dim), jnp.float32)
    z2 = jax.random.normal(keys[10], (batch2, data_dim), jnp.float32)
    cond2 = jax.random.randint(keys[11], (batch2,), 0, 4).astype(jnp.float32)
    loss2 = jax.block_until_ready(
        jax.jit(functools.partial(nll_loss_pallas, max_tile_rows=8))(
            inter2, z2, cond2, params))
    ref2 = nll_loss_ref(inter2, z2, cond2, params)
    assert jnp.allclose(loss2, ref2, rtol=1e-5, atol=1e-4), (loss2, ref2)

    # 3) bf16 matmul operands (v6e/v7x MXU-native), f32 accumulation — numerics change,
    #    validated at relaxed tolerance (tanh-bounded log-det keeps the error small).
    loss_bf16 = jax.block_until_ready(
        jax.jit(functools.partial(nll_loss_pallas, mm_dtype=jnp.bfloat16))(
            intermediates, z, condition, params))
    assert jnp.allclose(loss_bf16, ref, rtol=2e-2, atol=6e-2), (loss_bf16, ref)

    print("KERNEL_OK")
</pallas_src>

<mosaic_0001>
module attributes {stable_mosaic.version = 11 : i64} {
  func.func @_nll_kernel(%arg0: i32, %arg1: memref<3x8x8xf32, #tpu.memory_space<vmem>>, %arg2: memref<8x1xf32, #tpu.memory_space<vmem>>, %arg3: memref<8x8xf32, #tpu.memory_space<vmem>>, %arg4: memref<3x8x96xf32, #tpu.memory_space<vmem>>, %arg5: memref<1x96xf32, #tpu.memory_space<vmem>>, %arg6: memref<1x96xf32, #tpu.memory_space<vmem>>, %arg7: memref<96x96xf32, #tpu.memory_space<vmem>>, %arg8: memref<1x96xf32, #tpu.memory_space<vmem>>, %arg9: memref<96x12xf32, #tpu.memory_space<vmem>>, %arg10: memref<1x12xf32, #tpu.memory_space<vmem>>, %arg11: memref<1x8x128xf32, #tpu.memory_space<vmem>>) attributes {dimension_semantics = [#tpu.dimension_semantics<parallel>], iteration_bounds = array<i64: 1>, scalar_prefetch = 0 : i64, scratch_operands = 0 : i64, tpu.core_type = #tpu.core_type<tc>, window_params = [{transform_indices = @transform_0, window_bounds = array<i64: 3, 8, 8>}, {transform_indices = @transform_1, window_bounds = array<i64: 8, 1>}, {transform_indices = @transform_2, window_bounds = array<i64: 8, 8>}, {pipeline_mode = #tpu.pipeline_mode<synchronous>, transform_indices = @transform_3, window_bounds = array<i64: 3, 8, 96>}, {pipeline_mode = #tpu.pipeline_mode<synchronous>, transform_indices = @transform_4, window_bounds = array<i64: 1, 96>}, {pipeline_mode = #tpu.pipeline_mode<synchronous>, transform_indices = @transform_5, window_bounds = array<i64: 1, 96>}, {pipeline_mode = #tpu.pipeline_mode<synchronous>, transform_indices = @transform_6, window_bounds = array<i64: 96, 96>}, {pipeline_mode = #tpu.pipeline_mode<synchronous>, transform_indices = @transform_7, window_bounds = array<i64: 1, 96>}, {pipeline_mode = #tpu.pipeline_mode<synchronous>, transform_indices = @transform_8, window_bounds = array<i64: 96, 12>}, {pipeline_mode = #tpu.pipeline_mode<synchronous>, transform_indices = @transform_9, window_bounds = array<i64: 1, 12>}, {transform_indices = @transform_10, window_bounds = array<i64: 1, 8, 128>}]} {
    %c0 = arith.constant 0 : index
    %c0_0 = arith.constant 0 : index
    %0 = vector.load %arg2[%c0, %c0_0] : memref<8x1xf32, #tpu.memory_space<vmem>>, vector<8x1xf32>
    %c0_1 = arith.constant 0 : index
    %c0_2 = arith.constant 0 : index
    %1 = vector.load %arg5[%c0_1, %c0_2] : memref<1x96xf32, #tpu.memory_space<vmem>>, vector<1x96xf32>
    %2 = vector.broadcast %0 : vector<8x1xf32> to vector<8x96xf32>
    %3 = vector.broadcast %1 : vector<1x96xf32> to vector<8x96xf32>
    %4 = arith.mulf %2, %3 : vector<8x96xf32>
    %c0_3 = arith.constant 0 : index
    %c0_4 = arith.constant 0 : index
    %5 = vector.load %arg6[%c0_3, %c0_4] : memref<1x96xf32, #tpu.memory_space<vmem>>, vector<1x96xf32>
    %6 = vector.broadcast %5 : vector<1x96xf32> to vector<8x96xf32>
    %7 = arith.addf %4, %6 : vector<8x96xf32>
    %c0_5 = arith.constant 0 : index
    %c0_6 = arith.constant 0 : index
    %c0_7 = arith.constant 0 : index
    %8 = vector.load %arg1[%c0_5, %c0_6, %c0_7] : memref<3x8x8xf32, #tpu.memory_space<vmem>>, vector<1x8x8xf32>
    %9 = vector.shape_cast %8 : vector<1x8x8xf32> to vector<8x8xf32>
    %c0_8 = arith.constant 0 : index
    %c0_9 = arith.constant 0 : index
    %c0_10 = arith.constant 0 : index
    %10 = vector.load %arg4[%c0_8, %c0_9, %c0_10] : memref<3x8x96xf32, #tpu.memory_space<vmem>>, vector<1x8x96xf32>
    %11 = vector.shape_cast %10 : vector<1x8x96xf32> to vector<8x96xf32>
    %cst = arith.constant dense<0.000000e+00> : vector<8x96xf32>
    %12 = tpu.matmul %9, %11, %cst {dimension_numbers = #tpu.dot_dimension_numbers<[1], [0], [0], [1], [0, 0, 1, 1], [], []>} : vector<8x8xf32>, vector<8x96xf32>, vector<8x96xf32> -> vector<8x96xf32>
    %13 = arith.addf %7, %12 : vector<8x96xf32>
    %c1 = arith.constant 1 : index
    %c0_11 = arith.constant 0 : index
    %c0_12 = arith.constant 0 : index
    %14 = vector.load %arg1[%c1, %c0_11, %c0_12] : memref<3x8x8xf32, #tpu.memory_space<vmem>>, vector<1x8x8xf32>
    %15 = vector.shape_cast %14 : vector<1x8x8xf32> to vector<8x8xf32>
    %c1_13 = arith.constant 1 : index
    %c0_14 = arith.constant 0 : index
    %c0_15 = arith.constant 0 : index
    %16 = vector.load %arg4[%c1_13, %c0_14, %c0_15] : memref<3x8x96xf32, #tpu.memory_space<vmem>>, vector<1x8x96xf32>
    %17 = vector.shape_cast %16 : vector<1x8x96xf32> to vector<8x96xf32>
    %cst_16 = arith.constant dense<0.000000e+00> : vector<8x96xf32>
    %18 = tpu.matmul %15, %17, %cst_16 {dimension_numbers = #tpu.dot_dimension_numbers<[1], [0], [0], [1], [0, 0, 1, 1], [], []>} : vector<8x8xf32>, vector<8x96xf32>, vector<8x96xf32> -> vector<8x96xf32>
    %19 = arith.addf %13, %18 : vector<8x96xf32>
    %c2 = arith.constant 2 : index
    %c0_17 = arith.constant 0 : index
    %c0_18 = arith.constant 0 : index
    %20 = vector.load %arg1[%c2, %c0_17, %c0_18] : memref<3x8x8xf32, #tpu.memory_space<vmem>>, vector<1x8x8xf32>
    %21 = vector.shape_cast %20 : vector<1x8x8xf32> to vector<8x8xf32>
    %c2_19 = arith.constant 2 : index
    %c0_20 = arith.constant 0 : index
    %c0_21 = arith.constant 0 : index
    %22 = vector.load %arg4[%c2_19, %c0_20, %c0_21] : memref<3x8x96xf32, #tpu.memory_space<vmem>>, vector<1x8x96xf32>
    %23 = vector.shape_cast %22 : vector<1x8x96xf32> to vector<8x96xf32>
    %cst_22 = arith.constant dense<0.000000e+00> : vector<8x96xf32>
    %24 = tpu.matmul %21, %23, %cst_22 {dimension_numbers = #tpu.dot_dimension_numbers<[1], [0], [0], [1], [0, 0, 1, 1], [], []>} : vector<8x8xf32>, vector<8x96xf32>, vector<8x96xf32> -> vector<8x96xf32>
    %25 = arith.addf %19, %24 : vector<8x96xf32>
    %cst_23 = arith.constant 0.000000e+00 : f32
    %26 = vector.broadcast %cst_23 : f32 to vector<8x96xf32>
    %27 = arith.maximumf %25, %26 : vector<8x96xf32>
    %c0_24 = arith.constant 0 : index
    %c0_25 = arith.constant 0 : index
    %28 = vector.load %arg7[%c0_24, %c0_25] : memref<96x96xf32, #tpu.memory_space<vmem>>, vector<96x96xf32>
    %cst_26 = arith.constant dense<0.000000e+00> : vector<8x96xf32>
    %29 = tpu.matmul %27, %28, %cst_26 {dimension_numbers = #tpu.dot_dimension_numbers<[1], [0], [0], [1], [0, 0, 1, 1], [], []>} : vector<8x96xf32>, vector<96x96xf32>, vector<8x96xf32> -> vector<8x96xf32>
    %c0_27 = arith.constant 0 : index
    %c0_28 = arith.constant 0 : index
    %30 = vector.load %arg8[%c0_27, %c0_28] : memref<1x96xf32, #tpu.memory_space<vmem>>, vector<1x96xf32>
    %31 = vector.broadcast %30 : vector<1x96xf32> to vector<8x96xf32>
    %32 = arith.addf %29, %31 : vector<8x96xf32>
    %cst_29 = arith.constant 0.000000e+00 : f32
    %33 = vector.broadcast %cst_29 : f32 to vector<8x96xf32>
    %34 = arith.maximumf %32, %33 : vector<8x96xf32>
    %c0_30 = arith.constant 0 : index
    %c0_31 = arith.constant 0 : index
    %35 = vector.load %arg9[%c0_30, %c0_31] : memref<96x12xf32, #tpu.memory_space<vmem>>, vector<96x12xf32>
    %cst_32 = arith.constant dense<0.000000e+00> : vector<8x12xf32>
    %36 = tpu.matmul %34, %35, %cst_32 {dimension_numbers = #tpu.dot_dimension_numbers<[1], [0], [0], [1], [0, 0, 1, 1], [], []>} : vector<8x96xf32>, vector<96x12xf32>, vector<8x12xf32> -> vector<8x12xf32>
    %c0_33 = arith.constant 0 : index
    %c0_34 = arith.constant 0 : index
    %37 = vector.load %arg10[%c0_33, %c0_34] : memref<1x12xf32, #tpu.memory_space<vmem>>, vector<1x12xf32>
    %38 = vector.broadcast %37 : vector<1x12xf32> to vector<8x12xf32>
    %39 = arith.addf %36, %38 : vector<8x12xf32>
    %40 = math.tanh %39 : vector<8x12xf32>
    %cst_35 = arith.constant dense<0.000000e+00> : vector<8xf32>
    %41 = vector.multi_reduction <add>, %40, %cst_35 [1] : vector<8x12xf32> to vector<8xf32>
    %42 = vector.shape_cast %41 : vector<8xf32> to vector<8x1xf32>
    %c0_36 = arith.constant 0 : index
    %c0_37 = arith.constant 0 : index
    %43 = vector.load %arg3[%c0_36, %c0_37] : memref<8x8xf32, #tpu.memory_space<vmem>>, vector<8x8xf32>
    %44 = arith.mulf %43, %43 : vector<8x8xf32>
    %cst_38 = arith.constant dense<0.000000e+00> : vector<8xf32>
    %45 = vector.multi_reduction <add>, %44, %cst_38 [1] : vector<8x8xf32> to vector<8xf32>
    %46 = vector.shape_cast %45 : vector<8xf32> to vector<8x1xf32>
    %cst_39 = arith.constant 5.000000e-01 : f32
    %47 = vector.broadcast %cst_39 : f32 to vector<8x1xf32>
    %48 = arith.mulf %47, %46 : vector<8x1xf32>
    %49 = arith.subf %48, %42 : vector<8x1xf32>
    %c8_i32 = arith.constant 8 : i32
    %50 = arith.muli %arg0, %c8_i32 : i32
    %51 = tpu.iota {dimensions = array<i32: 0>} : vector<8x1xi32>
    %52 = vector.broadcast %50 : i32 to vector<8x1xi32>
    %53 = arith.addi %52, %51 : vector<8x1xi32>
    %c8_i32_40 = arith.constant 8 : i32
    %54 = vector.broadcast %c8_i32_40 : i32 to vector<8x1xi32>
    %55 = arith.cmpi slt, %53, %54 : vector<8x1xi32>
    %cst_41 = arith.constant 0.000000e+00 : f32
    %56 = vector.broadcast %cst_41 : f32 to vector<8x1xf32>
    %57 = arith.select %55, %49, %56 : vector<8x1xi1>, vector<8x1xf32>
    %cst_42 = arith.constant dense<0.000000e+00> : vector<1xf32>
    %58 = vector.multi_reduction <add>, %57, %cst_42 [0] : vector<8x1xf32> to vector<1xf32>
    %59 = vector.shape_cast %58 : vector<1xf32> to vector<1x1xf32>
    %cst_43 = arith.constant 1.250000e-01 : f32
    %60 = vector.broadcast %cst_43 : f32 to vector<1x1xf32>
    %61 = arith.mulf %59, %60 : vector<1x1xf32>
    %62 = vector.shape_cast %61 : vector<1x1xf32> to vector<1x1x1xf32>
    %63 = vector.shape_cast %62 : vector<1x1x1xf32> to vector<1x1x1xf32>
    %64 = vector.broadcast %63 : vector<1x1x1xf32> to vector<1x8x128xf32>
    %c0_44 = arith.constant 0 : index
    %c0_45 = arith.constant 0 : index
    %c0_46 = arith.constant 0 : index
    %65 = vector.load %arg11[%c0_44, %c0_45, %c0_46] : memref<1x8x128xf32, #tpu.memory_space<vmem>>, vector<1x8x128xf32>
    tpu.vector_store %arg11[%c0_44, %c0_45, %c0_46], %64 {strides = array<i32>} : memref<1x8x128xf32, #tpu.memory_space<vmem>>, vector<1x8x128xf32>,
    return
  }
  func.func @transform_0(%arg0: i32) -> (i32, i32, i32) {
    %c0_i32 = arith.constant 0 : i32
    %c0_i32_0 = arith.constant 0 : i32
    %c0_i32_1 = arith.constant 0 : i32
    return %c0_i32, %arg0, %c0_i32_0 : i32, i32, i32
  }
  func.func @transform_1(%arg0: i32) -> (i32, i32) {
    %c0_i32 = arith.constant 0 : i32
    %c0_i32_0 = arith.constant 0 : i32
    return %arg0, %c0_i32 : i32, i32
  }
  func.func @transform_2(%arg0: i32) -> (i32, i32) {
    %c0_i32 = arith.constant 0 : i32
    %c0_i32_0 = arith.constant 0 : i32
    return %arg0, %c0_i32 : i32, i32
  }
  func.func @transform_3(%arg0: i32) -> (i32, i32, i32) {
    %c0_i32 = arith.constant 0 : i32
    %c0_i32_0 = arith.constant 0 : i32
    %c0_i32_1 = arith.constant 0 : i32
    %c0_i32_2 = arith.constant 0 : i32
    return %c0_i32, %c0_i32_0, %c0_i32_1 : i32, i32, i32
  }
  func.func @transform_4(%arg0: i32) -> (i32, i32) {
    %c0_i32 = arith.constant 0 : i32
    %c0_i32_0 = arith.constant 0 : i32
    %c0_i32_1 = arith.constant 0 : i32
    return %c0_i32, %c0_i32_0 : i32, i32
  }
  func.func @transform_5(%arg0: i32) -> (i32, i32) {
    %c0_i32 = arith.constant 0 : i32
    %c0_i32_0 = arith.constant 0 : i32
    %c0_i32_1 = arith.constant 0 : i32
    return %c0_i32, %c0_i32_0 : i32, i32
  }
  func.func @transform_6(%arg0: i32) -> (i32, i32) {
    %c0_i32 = arith.constant 0 : i32
    %c0_i32_0 = arith.constant 0 : i32
    %c0_i32_1 = arith.constant 0 : i32
    return %c0_i32, %c0_i32_0 : i32, i32
  }
  func.func @transform_7(%arg0: i32) -> (i32, i32) {
    %c0_i32 = arith.constant 0 : i32
    %c0_i32_0 = arith.constant 0 : i32
    %c0_i32_1 = arith.constant 0 : i32
    return %c0_i32, %c0_i32_0 : i32, i32
  }
  func.func @transform_8(%arg0: i32) -> (i32, i32) {
    %c0_i32 = arith.constant 0 : i32
    %c0_i32_0 = arith.constant 0 : i32
    %c0_i32_1 = arith.constant 0 : i32
    return %c0_i32, %c0_i32_0 : i32, i32
  }
  func.func @transform_9(%arg0: i32) -> (i32, i32) {
    %c0_i32 = arith.constant 0 : i32
    %c0_i32_0 = arith.constant 0 : i32
    %c0_i32_1 = arith.constant 0 : i32
    return %c0_i32, %c0_i32_0 : i32, i32
  }
  func.func @transform_10(%arg0: i32) -> (i32, i32, i32) {
    %c0_i32 = arith.constant 0 : i32
    %c0_i32_0 = arith.constant 0 : i32
    %c0_i32_1 = arith.constant 0 : i32
    return %arg0, %c0_i32, %c0_i32_0 : i32, i32, i32
  }
}

</mosaic_0001>

<llo_original>
// kernel: squeeze.5
$region0: #{squeeze.5}
  %s0 = inlined_call_operand.vmem [shape: f32[3,1,32], index: 0, kind: input, shape index: {}]
  %s1 = inlined_call_operand.vmem [shape: f32[1,96], index: 1, kind: output, shape index: {}]
  $region1: #{squeeze.5} parent=0
    #allocation0 [shape = 'u8[4096]{0}', space=vmem, size = 0x1000, scoped, tag = 'scoped mem for output reshape']
    #allocation1 [shape = 'u8[4096]{0}', space=vmem, size = 0x1000, scoped, tag = 'scoped mem for input reshape']
    %s3 = sshll.u32 1, 4
    %s4 = ssub.s32 %s3, 1
    %v5 = vld [vmem:[%s0] sm:%s4]
    %6 = vst [vmem:[#allocation1] sm:%s4] %v5
    %v7 = vld [vmem:[#allocation1] sm:$0x1]
    %vm8 = vcmask 261120
    %9 = vst.msk [vmem:[#allocation0] sm:$0x1] %vm8, %v7
    %s10 = scalar_lea.vmem [#allocation1], 2
    %v11 = vld [vmem:[%s10] sm:$0x1]
    %12 = vrot.lane.b32.xlu0 %v11, 64
    %v13 = vpop.permute.xlu0 %12
    %vm14 = vcmask 785920
    %15 = vst.msk [vmem:[#allocation0] sm:$0x1] %vm14, %v13
    %s16 = scalar_lea.vmem [#allocation1], 1
    %v17 = vld [vmem:[%s16] sm:$0x1]
    %18 = vrot.lane.b32.xlu0 %v17, 32
    %v19 = vpop.permute.xlu0 %18
    %vm20 = vcmask 523520
    %21 = vst.msk [vmem:[#allocation0] sm:$0x1] %vm20, %v19
    %s23 = sshll.u32 1, 1
    %s24 = ssub.s32 %s23, 1
    %v26 = vld [vmem:[#allocation0] sm:%s24]
    %s27 = sshll.u32 1, 1
    %s28 = ssub.s32 %s27, 1
    %29 = vst [vmem:[%s1] sm:%s28] %v26

// kernel: squeeze.6
$region0: #{squeeze.6}
  %s0 = inlined_call_operand.vmem [shape: f32[3,32], index: 0, kind: input, shape index: {}]
  %s1 = inlined_call_operand.vmem [shape: f32[1,96], index: 1, kind: output, shape index: {}]
  $region1: #{squeeze.6} parent=0
    #allocation0 [shape = 'u8[4096]{0}', space=vmem, size = 0x1000, scoped, tag = 'scoped mem for output reshape']
    #allocation1 [shape = 'u8[4096]{0}', space=vmem, size = 0x1000, scoped, tag = 'scoped mem for input reshape']
    %s3 = sshll.u32 1, 4
    %s4 = ssub.s32 %s3, 1
    %v5 = vld [vmem:[%s0] sm:%s4]
    %6 = vst [vmem:[#allocation1] sm:%s4] %v5
    %v7 = vld [vmem:[#allocation1] sm:$0x1]
    %vm8 = vcmask 261120
    %9 = vst.msk [vmem:[#allocation0] sm:$0x1] %vm8, %v7
    %s10 = scalar_lea.vmem [#allocation1], 2
    %v11 = vld [vmem:[%s10] sm:$0x1]
    %12 = vrot.lane.b32.xlu0 %v11, 64
    %v13 = vpop.permute.xlu0 %12
    %vm14 = vcmask 785920
    %15 = vst.msk [vmem:[#allocation0] sm:$0x1] %vm14, %v13
    %s16 = scalar_lea.vmem [#allocation1], 1
    %v17 = vld [vmem:[%s16] sm:$0x1]
    %18 = vrot.lane.b32.xlu0 %v17, 32
    %v19 = vpop.permute.xlu0 %18
    %vm20 = vcmask 523520
    %21 = vst.msk [vmem:[#allocation0] sm:$0x1] %vm20, %v19
    %s23 = sshll.u32 1, 1
    %s24 = ssub.s32 %s23, 1
    %v26 = vld [vmem:[#allocation0] sm:%s24]
    %s27 = sshll.u32 1, 1
    %s28 = ssub.s32 %s27, 1
    %29 = vst [vmem:[%s1] sm:%s28] %v26

// kernel: squeeze.8
$region0: #{squeeze.8}
  %s0 = inlined_call_operand.vmem [shape: f32[3,4], index: 0, kind: input, shape index: {}]
  %s1 = inlined_call_operand.vmem [shape: f32[1,12], index: 1, kind: output, shape index: {}]
  $region1: #{squeeze.8} parent=0
    #allocation0 [shape = 'u8[4096]{0}', space=vmem, size = 0x1000, scoped, tag = 'scoped mem for output reshape']
    #allocation1 [shape = 'u8[4096]{0}', space=vmem, size = 0x1000, scoped, tag = 'scoped mem for input reshape']
    %s3 = sshll.u32 1, 4
    %s4 = ssub.s32 %s3, 1
    %v5 = vld [vmem:[%s0] sm:%s4]
    %6 = vst [vmem:[#allocation1] sm:%s4] %v5
    %v7 = vld [vmem:[#allocation1] sm:$0x1]
    %vm8 = vcmask 31744
    %9 = vst.msk [vmem:[#allocation0] sm:$0x1] %vm8, %v7
    %s10 = scalar_lea.vmem [#allocation1], 2
    %v11 = vld [vmem:[%s10] sm:$0x1]
    %12 = vrot.lane.b32.xlu0 %v11, 8
    %v13 = vpop.permute.xlu0 %12
    %vm14 = vcmask 97344
    %15 = vst.msk [vmem:[#allocation0] sm:$0x1] %vm14, %v13
    %s16 = scalar_lea.vmem [#allocation1], 1
    %v17 = vld [vmem:[%s16] sm:$0x1]
    %18 = vrot.lane.b32.xlu0 %v17, 4
    %v19 = vpop.permute.xlu0 %18
    %vm20 = vcmask 64544
    %21 = vst.msk [vmem:[#allocation0] sm:$0x1] %vm20, %v19
    %s23 = sshll.u32 1, 1
    %s24 = ssub.s32 %s23, 1
    %v26 = vld [vmem:[#allocation0] sm:%s24]
    %s27 = sshll.u32 1, 1
    %s28 = ssub.s32 %s27, 1
    %29 = vst [vmem:[%s1] sm:%s28] %v26

// kernel: nll_loss_pallas.1
$region0: #{nll_loss_pallas.1}
  #allocation0 [shape = 'u32[]', space=smem, size = 0x4, offset = 0x4, fixed_abs, tag = 'smem constant byte address 0x4 - core index']
  #allocation1 [shape = 'u32[144,128]{1,0:T(1,128)}', space=vmem, size = 0x12000, scoped, tag = 'internal scratch']
  %s0 = inlined_call_operand.vmem [shape: f32[3,8,8], index: 0, kind: input, shape index: {}]
  %s1 = inlined_call_operand.vmem [shape: f32[8,1], index: 1, kind: input, shape index: {}]
  %s2 = inlined_call_operand.vmem [shape: f32[8,8], index: 2, kind: input, shape index: {}]
  %s3 = inlined_call_operand.vmem [shape: f32[3,8,96], index: 3, kind: input, shape index: {}]
  %s4 = inlined_call_operand.vmem [shape: f32[1,96], index: 4, kind: input, shape index: {}]
  %s5 = inlined_call_operand.vmem [shape: f32[1,96], index: 5, kind: input, shape index: {}]
  %s6 = inlined_call_operand.vmem [shape: f32[96,96], index: 6, kind: input, shape index: {}]
  %s7 = inlined_call_operand.vmem [shape: f32[1,96], index: 7, kind: input, shape index: {}]
  %s8 = inlined_call_operand.vmem [shape: f32[96,12], index: 8, kind: input, shape index: {}]
  %s9 = inlined_call_operand.vmem [shape: f32[1,12], index: 9, kind: input, shape index: {}]
  %s10 = inlined_call_operand.vmem [shape: f32[1,8,128], index: 10, kind: output, shape index: {}]
  %s11 = sld [smem:[#allocation0]]
  $region50: #{nll_loss_pallas.1} parent=0
    _
  %s13 = ssub.s32 1, %s11
  %s14 = scalar_select 0, %s13, %s11
  // Predicated region
  $region2: #{nll_loss_pallas.1} parent=0 // pred_check
    _
  $region3: #{nll_loss_pallas.1} parent=0 // pred_check_branch
    %16 = sbr.rel (0) target = $region5
  $region4: #{nll_loss_pallas.1} parent=0 // pred_region
    _
  $region5: #{nll_loss_pallas.1} parent=0 // pred_fallthru
    _
  // Predicated region
  $region6: #{nll_loss_pallas.1} parent=0 // pred_check
    _
  $region7: #{nll_loss_pallas.1} parent=0 // pred_check_branch
    %18 = sbr.rel (0) target = $region9
  $region8: #{nll_loss_pallas.1} parent=0 // pred_region
    _
  $region9: #{nll_loss_pallas.1} parent=0 // pred_fallthru
    _
  // Predicated region
  $region10: #{nll_loss_pallas.1} parent=0 // pred_check
    _
  $region11: #{nll_loss_pallas.1} parent=0 // pred_check_branch
    %20 = sbr.rel (0) target = $region13
  $region12: #{nll_loss_pallas.1} parent=0 // pred_region
    _
  $region13: #{nll_loss_pallas.1} parent=0 // pred_fallthru
    _
  // Predicated region
  $region14: #{nll_loss_pallas.1} parent=0 // pred_check
    _
  $region15: #{nll_loss_pallas.1} parent=0 // pred_check_branch
    %22 = sbr.rel (0) target = $region17
  $region16: #{nll_loss_pallas.1} parent=0 // pred_region
    _
  $region17: #{nll_loss_pallas.1} parent=0 // pred_fallthru
    _
  // Predicated region
  $region18: #{nll_loss_pallas.1} parent=0 // pred_check
    _
  $region19: #{nll_loss_pallas.1} parent=0 // pred_check_branch
    %24 = sbr.rel (0) target = $region21
  $region20: #{nll_loss_pallas.1} parent=0 // pred_region
    _
  $region21: #{nll_loss_pallas.1} parent=0 // pred_fallthru
    _
  // Predicated region
  $region22: #{nll_loss_pallas.1} parent=0 // pred_check
    _
  $region23: #{nll_loss_pallas.1} parent=0 // pred_check_branch
    %26 = sbr.rel (0) target = $region25
  $region24: #{nll_loss_pallas.1} parent=0 // pred_region
    _
  $region25: #{nll_loss_pallas.1} parent=0 // pred_fallthru
    _
  // Predicated region
  $region26: #{nll_loss_pallas.1} parent=0 // pred_check
    _
  $region27: #{nll_loss_pallas.1} parent=0 // pred_check_branch
    %28 = sbr.rel (0) target = $region29
  $region28: #{nll_loss_pallas.1} parent=0 // pred_region
    _
  $region29: #{nll_loss_pallas.1} parent=0 // pred_fallthru
    _
  // Predicated region
  $region30: #{nll_loss_pallas.1} parent=0 // pred_check
    _
  $region31: #{nll_loss_pallas.1} parent=0 // pred_check_branch
    %30 = sbr.rel (0) target = $region33
  $region32: #{nll_loss_pallas.1} parent=0 // pred_region
    _
  $region33: #{nll_loss_pallas.1} parent=0 // pred_fallthru
    _
  // Predicated region
  $region34: #{nll_loss_pallas.1} parent=0 // pred_check
    _
  $region35: #{nll_loss_pallas.1} parent=0 // pred_check_branch
    %32 = sbr.rel (0) target = $region37
  $region36: #{nll_loss_pallas.1} parent=0 // pred_region
    _
  $region37: #{nll_loss_pallas.1} parent=0 // pred_fallthru
    _
  // Predicated region
  $region38: #{nll_loss_pallas.1} parent=0 // pred_check
    _
  $region39: #{nll_loss_pallas.1} parent=0 // pred_check_branch
    %34 = sbr.rel (0) target = $region41
  $region40: #{nll_loss_pallas.1} parent=0 // pred_region
    _
  $region41: #{nll_loss_pallas.1} parent=0 // pred_fallthru
    _
  %v35 = vld [vmem:[%s1] sm:$0xff]
  %v36 = vld [vmem:[%s4] sm:$0x1]
  %38 = vset.pattern.permute.xlu0 0
  %39 = vperm.xlu0 %38, %v35
  %v40 = vpop.permute.xlu0 %39
  %v43 = vlaneseq
  %v44 = vshrl.u32 %v43, 7
  %v45 = vsub.s32 0, %v44
  %v46 = vrot.slane %v36, %v45
  %v48 = vmul.f32 %v40, %v46
  %v49 = vld [vmem:[%s5] sm:$0x1]
  %v51 = vlaneseq
  %v52 = vshrl.u32 %v51, 7
  %v53 = vsub.s32 0, %v52
  %v54 = vrot.slane %v49, %v53
  %v56 = vadd.f32 %v48, %v54
  %v57 = vld [vmem:[%s0] sm:$0xff]
  %v58 = vld [vmem:[%s3] sm:$0xff]
  %vm59 = vcmask 64512
  %v61 = vsel %vm59, %v57, 0
  %63 = vmatprep.subr.mxu0 0.0
  %64 = vmatpush1.msra.mxu0 0.0
  %65 = vmatprep.subr.mxu0 0.0
  %66 = vmatpush1.msra.mxu0 0.0
  %67 = vmatprep.subr.mxu0 0.0
  %68 = vmatpush1.msra.mxu0 0.0
  %69 = vmatprep.subr.mxu0 0.0
  %70 = vmatpush1.msra.mxu0 0.0
  %71 = vmatprep.subr.mxu0 0.0
  %72 = vmatpush1.msra.mxu0 0.0
  %73 = vmatprep.subr.mxu0 0.0
  %74 = vmatpush1.msra.mxu0 0.0
  %75 = vmatprep.subr.mxu0 0.0
  %76 = vmatpush1.msra.mxu0 0.0
  %77 = vmatprep.subr.mxu0 0.0
  %78 = vmatpush1.msra.mxu0 0.0
  %79 = vmatprep.subr.mxu0 0.0
  %80 = vmatpush1.msra.mxu0 0.0
  %81 = vmatprep.subr.mxu0 0.0
  %82 = vmatpush1.msra.mxu0 0.0
  %83 = vmatprep.subr.mxu0 0.0
  %84 = vmatpush1.msra.mxu0 0.0
  %85 = vmatprep.subr.mxu0 0.0
  %86 = vmatpush1.msra.mxu0 0.0
  %87 = vmatprep.subr.mxu0 0.0
  %88 = vmatpush1.msra.mxu0 0.0
  %89 = vmatprep.subr.mxu0 0.0
  %90 = vmatpush1.msra.mxu0 0.0
  %91 = vmatprep.subr.mxu0 0.0
  %92 = vmatpush1.msra.mxu0 0.0
  %93 = vmatprep.subr.mxu0 0.0
  %94 = vmatpush1.msra.mxu0 %v58
  %95 = vmatprep.subr.mxu0 0.0
  %96 = vmatpush2.msra.mxu0 0.0
  %97 = vmatprep.subr.mxu0 0.0
  %98 = vmatpush2.msra.mxu0 0.0
  %99 = vmatprep.subr.mxu0 0.0
  %100 = vmatpush2.msra.mxu0 0.0
  %101 = vmatprep.subr.mxu0 0.0
  %102 = vmatpush2.msra.mxu0 0.0
  %103 = vmatprep.subr.mxu0 0.0
  %104 = vmatpush2.msra.mxu0 0.0
  %105 = vmatprep.subr.mxu0 0.0
  %106 = vmatpush2.msra.mxu0 0.0
  %107 = vmatprep.subr.mxu0 0.0
  %108 = vmatpush2.msra.mxu0 0.0
  %109 = vmatprep.subr.mxu0 0.0
  %110 = vmatpush2.msra.mxu0 0.0
  %111 = vmatprep.subr.mxu0 0.0
  %112 = vmatpush2.msra.mxu0 0.0
  %113 = vmatprep.subr.mxu0 0.0
  %114 = vmatpush2.msra.mxu0 0.0
  %115 = vmatprep.subr.mxu0 0.0
  %116 = vmatpush2.msra.mxu0 0.0
  %117 = vmatprep.subr.mxu0 0.0
  %118 = vmatpush2.msra.mxu0 0.0
  %119 = vmatprep.subr.mxu0 0.0
  %120 = vmatpush2.msra.mxu0 0.0
  %121 = vmatprep.subr.mxu0 0.0
  %122 = vmatpush2.msra.mxu0 0.0
  %123 = vmatprep.subr.mxu0 0.0
  %124 = vmatpush2.msra.mxu0 0.0
  %125 = vmatprep.subr.mxu0 0.0
  %126 = vmatpush2.msra.mxu0 0.0
  %127 = vmatprep.mubr.f32.mxu0 0.0
  %128 = vmatmul.mubr.f32.gmra.mxu0 %v61
  %v129 = vpop.f32.mrf.mxu0
  %v130 = vadd.f32 0.0, %v129
  %v131 = vpop.f32.mrf.mxu0
  %132 = vdwg.mxu0
  %v133 = vadd.f32 %v56, %v130
  %s134 = scalar_lea.vmem %s0, 8
  %v135 = vld [vmem:[%s134] sm:$0xff]
  %s136 = scalar_lea.vmem %s3, 8
  %v137 = vld [vmem:[%s136] sm:$0xff]
  %v139 = vsel %vm59, %v135, 0
  %141 = vmatprep.subr.mxu0 0.0
  %142 = vmatpush1.msra.mxu0 0.0
  %143 = vmatprep.subr.mxu0 0.0
  %144 = vmatpush1.msra.mxu0 0.0
  %145 = vmatprep.subr.mxu0 0.0
  %146 = vmatpush1.msra.mxu0 0.0
  %147 = vmatprep.subr.mxu0 0.0
  %148 = vmatpush1.msra.mxu0 0.0
  %149 = vmatprep.subr.mxu0 0.0
  %150 = vmatpush1.msra.mxu0 0.0
  %151 = vmatprep.subr.mxu0 0.0
  %152 = vmatpush1.msra.mxu0 0.0
  %153 = vmatprep.subr.mxu0 0.0
  %154 = vmatpush1.msra.mxu0 0.0
  %155 = vmatprep.subr.mxu0 0.0
  %156 = vmatpush1.msra.mxu0 0.0
  %157 = vmatprep.subr.mxu0 0.0
  %158 = vmatpush1.msra.mxu0 0.0
  %159 = vmatprep.subr.mxu0 0.0
  %160 = vmatpush1.msra.mxu0 0.0
  %161 = vmatprep.subr.mxu0 0.0
  %162 = vmatpush1.msra.mxu0 0.0
  %163 = vmatprep.subr.mxu0 0.0
  %164 = vmatpush1.msra.mxu0 0.0
  %165 = vmatprep.subr.mxu0 0.0
  %166 = vmatpush1.msra.mxu0 0.0
  %167 = vmatprep.subr.mxu0 0.0
  %168 = vmatpush1.msra.mxu0 0.0
  %169 = vmatprep.subr.mxu0 0.0
  %170 = vmatpush1.msra.mxu0 0.0
  %171 = vmatprep.subr.mxu0 0.0
  %172 = vmatpush1.msra.mxu0 %v137
  %173 = vmatprep.subr.mxu0 0.0
  %174 = vmatpush2.msra.mxu0 0.0
  %175 = vmatprep.subr.mxu0 0.0
  %176 = vmatpush2.msra.mxu0 0.0
  %177 = vmatprep.subr.mxu0 0.0
  %178 = vmatpush2.msra.mxu0 0.0
  %179 = vmatprep.subr.mxu0 0.0
  %180 = vmatpush2.msra.mxu0 0.0
  %181 = vmatprep.subr.mxu0 0.0
  %182 = vmatpush2.msra.mxu0 0.0
  %183 = vmatprep.subr.mxu0 0.0
  %184 = vmatpush2.msra.mxu0 0.0
  %185 = vmatprep.subr.mxu0 0.0
  %186 = vmatpush2.msra.mxu0 0.0
  %187 = vmatprep.subr.mxu0 0.0
  %188 = vmatpush2.msra.mxu0 0.0
  %189 = vmatprep.subr.mxu0 0.0
  %190 = vmatpush2.msra.mxu0 0.0
  %191 = vmatprep.subr.mxu0 0.0
  %192 = vmatpush2.msra.mxu0 0.0
  %193 = vmatprep.subr.mxu0 0.0
  %194 = vmatpush2.msra.mxu0 0.0
  %195 = vmatprep.subr.mxu0 0.0
  %196 = vmatpush2.msra.mxu0 0.0
  %197 = vmatprep.subr.mxu0 0.0
  %198 = vmatpush2.msra.mxu0 0.0
  %199 = vmatprep.subr.mxu0 0.0
  %200 = vmatpush2.msra.mxu0 0.0
  %201 = vmatprep.subr.mxu0 0.0
  %202 = vmatpush2.msra.mxu0 0.0
  %203 = vmatprep.subr.mxu0 0.0
  %204 = vmatpush2.msra.mxu0 0.0
  %205 = vmatprep.mubr.f32.mxu0 0.0
  %206 = vmatmul.mubr.f32.gmra.mxu0 %v139
  %v207 = vpop.f32.mrf.mxu0
  %v208 = vadd.f32 0.0, %v207
  %v209 = vpop.f32.mrf.mxu0
  %210 = vdwg.mxu0
  %v211 = vadd.f32 %v133, %v208
  %s212 = scalar_lea.vmem %s0, 16
  %v213 = vld [vmem:[%s212] sm:$0xff]
  %s214 = scalar_lea.vmem %s3, 16
  %v215 = vld [vmem:[%s214] sm:$0xff]
  %v217 = vsel %vm59, %v213, 0
  %219 = vmatprep.subr.mxu0 0.0
  %220 = vmatpush1.msra.mxu0 0.0
  %221 = vmatprep.subr.mxu0 0.0
  %222 = vmatpush1.msra.mxu0 0.0
  %223 = vmatprep.subr.mxu0 0.0
  %224 = vmatpush1.msra.mxu0 0.0
  %225 = vmatprep.subr.mxu0 0.0
  %226 = vmatpush1.msra.mxu0 0.0
  %227 = vmatprep.subr.mxu0 0.0
  %228 = vmatpush1.msra.mxu0 0.0
  %229 = vmatprep.subr.mxu0 0.0
  %230 = vmatpush1.msra.mxu0 0.0
  %231 = vmatprep.subr.mxu0 0.0
  %232 = vmatpush1.msra.mxu0 0.0
  %233 = vmatprep.subr.mxu0 0.0
  %234 = vmatpush1.msra.mxu0 0.0
  %235 = vmatprep.subr.mxu0 0.0
  %236 = vmatpush1.msra.mxu0 0.0
  %237 = vmatprep.subr.mxu0 0.0
  %238 = vmatpush1.msra.mxu0 0.0
  %239 = vmatprep.subr.mxu0 0.0
  %240 = vmatpush1.msra.mxu0 0.0
  %241 = vmatprep.subr.mxu0 0.0
  %242 = vmatpush1.msra.mxu0 0.0
  %243 = vmatprep.subr.mxu0 0.0
  %244 = vmatpush1.msra.mxu0 0.0
  %245 = vmatprep.subr.mxu0 0.0
  %246 = vmatpush1.msra.mxu0 0.0
  %247 = vmatprep.subr.mxu0 0.0
  %248 = vmatpush1.msra.mxu0 0.0
  %249 = vmatprep.subr.mxu0 0.0
  %250 = vmatpush1.msra.mxu0 %v215
  %251 = vmatprep.subr.mxu0 0.0
  %252 = vmatpush2.msra.mxu0 0.0
  %253 = vmatprep.subr.mxu0 0.0
  %254 = vmatpush2.msra.mxu0 0.0
  %255 = vmatprep.subr.mxu0 0.0
  %256 = vmatpush2.msra.mxu0 0.0
  %257 = vmatprep.subr.mxu0 0.0
  %258 = vmatpush2.msra.mxu0 0.0
  %259 = vmatprep.subr.mxu0 0.0
  %260 = vmatpush2.msra.mxu0 0.0
  %261 = vmatprep.subr.mxu0 0.0
  %262 = vmatpush2.msra.mxu0 0.0
  %263 = vmatprep.subr.mxu0 0.0
  %264 = vmatpush2.msra.mxu0 0.0
  %265 = vmatprep.subr.mxu0 0.0
  %266 = vmatpush2.msra.mxu0 0.0
  %267 = vmatprep.subr.mxu0 0.0
  %268 = vmatpush2.msra.mxu0 0.0
  %269 = vmatprep.subr.mxu0 0.0
  %270 = vmatpush2.msra.mxu0 0.0
  %271 = vmatprep.subr.mxu0 0.0
  %272 = vmatpush2.msra.mxu0 0.0
  %273 = vmatprep.subr.mxu0 0.0
  %274 = vmatpush2.msra.mxu0 0.0
  %275 = vmatprep.subr.mxu0 0.0
  %276 = vmatpush2.msra.mxu0 0.0
  %277 = vmatprep.subr.mxu0 0.0
  %278 = vmatpush2.msra.mxu0 0.0
  %279 = vmatprep.subr.mxu0 0.0
  %280 = vmatpush2.msra.mxu0 0.0
  %281 = vmatprep.subr.mxu0 0.0
  %282 = vmatpush2.msra.mxu0 0.0
  %283 = vmatprep.mubr.f32.mxu0 0.0
  %284 = vmatmul.mubr.f32.gmra.mxu0 %v217
  %v285 = vpop.f32.mrf.mxu0
  %v286 = vadd.f32 0.0, %v285
  %v287 = vpop.f32.mrf.mxu0
  %288 = vdwg.mxu0
  %v289 = vadd.f32 %v211, %v286
  %v290 = vmax.f32 %v289, 0.0
  %v291 = vld [vmem:[%s6] sm:$0xff]
  %v292 = vld [vmem:[%s6 + $0x8] sm:$0xff]
  %v293 = vld [vmem:[%s6 + $0x10] sm:$0xff]
  %v294 = vld [vmem:[%s6 + $0x18] sm:$0xff]
  %v295 = vld [vmem:[%s6 + $0x20] sm:$0xff]
  %v296 = vld [vmem:[%s6 + $0x28] sm:$0xff]
  %v297 = vld [vmem:[%s6 + $0x30] sm:$0xff]
  %v298 = vld [vmem:[%s6 + $0x38] sm:$0xff]
  %v299 = vld [vmem:[%s6 + $0x40] sm:$0xff]
  %v300 = vld [vmem:[%s6 + $0x48] sm:$0xff]
  %v301 = vld [vmem:[%s6 + $0x50] sm:$0xff]
  %v302 = vld [vmem:[%s6 + $0x58] sm:$0xff]
  %v303 = vld [vmem:[%s7] sm:$0x1]
  %v305 = vlaneseq
  %v306 = vshrl.u32 %v305, 7
  %v307 = vsub.s32 0, %v306
  %v308 = vrot.slane %v303, %v307
  %vm310 = vcmask 785408
  %v312 = vsel %vm310, %v290, 0
  %314 = vmatprep.subr.mxu0 0.0
  %315 = vmatpush1.msra.mxu0 0.0
  %316 = vmatprep.subr.mxu0 0.0
  %317 = vmatpush1.msra.mxu0 0.0
  %318 = vmatprep.subr.mxu0 0.0
  %319 = vmatpush1.msra.mxu0 0.0
  %320 = vmatprep.subr.mxu0 0.0
  %321 = vmatpush1.msra.mxu0 0.0
  %322 = vmatprep.subr.mxu0 0.0
  %323 = vmatpush1.msra.mxu0 %v302
  %324 = vmatprep.subr.mxu0 0.0
  %325 = vmatpush1.msra.mxu0 %v301
  %326 = vmatprep.subr.mxu0 0.0
  %327 = vmatpush1.msra.mxu0 %v300
  %328 = vmatprep.subr.mxu0 0.0
  %329 = vmatpush1.msra.mxu0 %v299
  %330 = vmatprep.subr.mxu0 0.0
  %331 = vmatpush1.msra.mxu0 %v298
  %332 = vmatprep.subr.mxu0 0.0
  %333 = vmatpush1.msra.mxu0 %v297
  %334 = vmatprep.subr.mxu0 0.0
  %335 = vmatpush1.msra.mxu0 %v296
  %336 = vmatprep.subr.mxu0 0.0
  %337 = vmatpush1.msra.mxu0 %v295
  %338 = vmatprep.subr.mxu0 0.0
  %339 = vmatpush1.msra.mxu0 %v294
  %340 = vmatprep.subr.mxu0 0.0
  %341 = vmatpush1.msra.mxu0 %v293
  %342 = vmatprep.subr.mxu0 0.0
  %343 = vmatpush1.msra.mxu0 %v292
  %344 = vmatprep.subr.mxu0 0.0
  %345 = vmatpush1.msra.mxu0 %v291
  %346 = vmatprep.subr.mxu0 0.0
  %347 = vmatpush2.msra.mxu0 0.0
  %348 = vmatprep.subr.mxu0 0.0
  %349 = vmatpush2.msra.mxu0 0.0
  %350 = vmatprep.subr.mxu0 0.0
  %351 = vmatpush2.msra.mxu0 0.0
  %352 = vmatprep.subr.mxu0 0.0
  %353 = vmatpush2.msra.mxu0 0.0
  %354 = vmatprep.subr.mxu0 0.0
  %355 = vmatpush2.msra.mxu0 0.0
  %356 = vmatprep.subr.mxu0 0.0
  %357 = vmatpush2.msra.mxu0 0.0
  %358 = vmatprep.subr.mxu0 0.0
  %359 = vmatpush2.msra.mxu0 0.0
  %360 = vmatprep.subr.mxu0 0.0
  %361 = vmatpush2.msra.mxu0 0.0
  %362 = vmatprep.subr.mxu0 0.0
  %363 = vmatpush2.msra.mxu0 0.0
  %364 = vmatprep.subr.mxu0 0.0
  %365 = vmatpush2.msra.mxu0 0.0
  %366 = vmatprep.subr.mxu0 0.0
  %367 = vmatpush2.msra.mxu0 0.0
  %368 = vmatprep.subr.mxu0 0.0
  %369 = vmatpush2.msra.mxu0 0.0
  %370 = vmatprep.subr.mxu0 0.0
  %371 = vmatpush2.msra.mxu0 0.0
  %372 = vmatprep.subr.mxu0 0.0
  %373 = vmatpush2.msra.mxu0 0.0
  %374 = vmatprep.subr.mxu0 0.0
  %375 = vmatpush2.msra.mxu0 0.0
  %376 = vmatprep.subr.mxu0 0.0
  %377 = vmatpush2.msra.mxu0 0.0
  %378 = vmatprep.mubr.f32.mxu0 0.0
  %379 = vmatmul.mubr.f32.gmra.mxu0 %v312
  %v380 = vpop.f32.mrf.mxu0
  %v381 = vadd.f32 %v308, %v380
  %v382 = vpop.f32.mrf.mxu0
  %383 = vdwg.mxu0
  %v384 = vmax.f32 %v381, 0.0
  %v385 = vld [vmem:[%s8] sm:$0xff]
  %v386 = vld [vmem:[%s8 + $0x8] sm:$0xff]
  %v387 = vld [vmem:[%s8 + $0x10] sm:$0xff]
  %v388 = vld [vmem:[%s8 + $0x18] sm:$0xff]
  %v389 = vld [vmem:[%s8 + $0x20] sm:$0xff]
  %v390 = vld [vmem:[%s8 + $0x28] sm:$0xff]
  %v391 = vld [vmem:[%s8 + $0x30] sm:$0xff]
  %v392 = vld [vmem:[%s8 + $0x38] sm:$0xff]
  %v393 = vld [vmem:[%s8 + $0x40] sm:$0xff]
  %v394 = vld [vmem:[%s8 + $0x48] sm:$0xff]
  %v395 = vld [vmem:[%s8 + $0x50] sm:$0xff]
  %v396 = vld [vmem:[%s8 + $0x58] sm:$0xff]
  %v397 = vld [vmem:[%s9] sm:$0x1]
  %v399 = vlaneseq
  %v400 = vshrl.u32 %v399, 7
  %v401 = vsub.s32 0, %v400
  %v402 = vrot.slane %v397, %v401
  %v405 = vsel %vm310, %v384, 0
  %407 = vmatprep.subr.mxu0 0.0
  %408 = vmatpush1.msra.mxu0 0.0
  %409 = vmatprep.subr.mxu0 0.0
  %410 = vmatpush1.msra.mxu0 0.0
  %411 = vmatprep.subr.mxu0 0.0
  %412 = vmatpush1.msra.mxu0 0.0
  %413 = vmatprep.subr.mxu0 0.0
  %414 = vmatpush1.msra.mxu0 0.0
  %415 = vmatprep.subr.mxu0 0.0
  %416 = vmatpush1.msra.mxu0 %v396
  %417 = vmatprep.subr.mxu0 0.0
  %418 = vmatpush1.msra.mxu0 %v395
  %419 = vmatprep.subr.mxu0 0.0
  %420 = vmatpush1.msra.mxu0 %v394
  %421 = vmatprep.subr.mxu0 0.0
  %422 = vmatpush1.msra.mxu0 %v393
  %423 = vmatprep.subr.mxu0 0.0
  %424 = vmatpush1.msra.mxu0 %v392
  %425 = vmatprep.subr.mxu0 0.0
  %426 = vmatpush1.msra.mxu0 %v391
  %427 = vmatprep.subr.mxu0 0.0
  %428 = vmatpush1.msra.mxu0 %v390
  %429 = vmatprep.subr.mxu0 0.0
  %430 = vmatpush1.msra.mxu0 %v389
  %431 = vmatprep.subr.mxu0 0.0
  %432 = vmatpush1.msra.mxu0 %v388
  %433 = vmatprep.subr.mxu0 0.0
  %434 = vmatpush1.msra.mxu0 %v387
  %435 = vmatprep.subr.mxu0 0.0
  %436 = vmatpush1.msra.mxu0 %v386
  %437 = vmatprep.subr.mxu0 0.0
  %438 = vmatpush1.msra.mxu0 %v385
  %439 = vmatprep.subr.mxu0 0.0
  %440 = vmatpush2.msra.mxu0 0.0
  %441 = vmatprep.subr.mxu0 0.0
  %442 = vmatpush2.msra.mxu0 0.0
  %443 = vmatprep.subr.mxu0 0.0
  %444 = vmatpush2.msra.mxu0 0.0
  %445 = vmatprep.subr.mxu0 0.0
  %446 = vmatpush2.msra.mxu0 0.0
  %447 = vmatprep.subr.mxu0 0.0
  %448 = vmatpush2.msra.mxu0 0.0
  %449 = vmatprep.subr.mxu0 0.0
  %450 = vmatpush2.msra.mxu0 0.0
  %451 = vmatprep.subr.mxu0 0.0
  %452 = vmatpush2.msra.mxu0 0.0
  %453 = vmatprep.subr.mxu0 0.0
  %454 = vmatpush2.msra.mxu0 0.0
  %455 = vmatprep.subr.mxu0 0.0
  %456 = vmatpush2.msra.mxu0 0.0
  %457 = vmatprep.subr.mxu0 0.0
  %458 = vmatpush2.msra.mxu0 0.0
  %459 = vmatprep.subr.mxu0 0.0
  %460 = vmatpush2.msra.mxu0 0.0
  %461 = vmatprep.subr.mxu0 0.0
  %462 = vmatpush2.msra.mxu0 0.0
  %463 = vmatprep.subr.mxu0 0.0
  %464 = vmatpush2.msra.mxu0 0.0
  %465 = vmatprep.subr.mxu0 0.0
  %466 = vmatpush2.msra.mxu0 0.0
  %467 = vmatprep.subr.mxu0 0.0
  %468 = vmatpush2.msra.mxu0 0.0
  %469 = vmatprep.subr.mxu0 0.0
  %470 = vmatpush2.msra.mxu0 0.0
  %471 = vmatprep.mubr.f32.mxu0 0.0
  %472 = vmatmul.mubr.f32.gmra.mxu0 %v405
  %v473 = vpop.f32.mrf.mxu0
  %v474 = vadd.f32 %v402, %v473
  %v475 = vpop.f32.mrf.mxu0
  %476 = vdwg.mxu0
  %v477 = vtanh.pop %v474
  %vm478 = vcmask 97280
  %v479 = vsel %vm478, %v477, 0.0
  %480 = vadd.xlane.f32.xlu0 %v479
  %v481 = vpop.xlane.xlu0 %480
  %v482 = vld [vmem:[%s2] sm:$0xff]
  %v483 = vmul.f32 %v482, %v482
  %v484 = vsel %vm59, %v483, 0.0
  %485 = vadd.xlane.f32.xlu0 %v484
  %v486 = vpop.xlane.xlu0 %485
  %v487 = vmul.f32 %v486, 0.5
  %v488 = vsub.f32 %v487, %v481
  %s489 = smul.u32 0, 8
  %v490 = vlaneseq
  %v491 = vshrl.u32 %v490, 7
  %v492 = vstv %s489
  %v493 = vadd.s32 %v492, %v491
  %vm494 = vcmp.lt.s32.totalorder %v493, 8
  %v495 = vsel %vm494, %v488, 0.0
  %v496 = vrot.slane %v495, 4
  %v497 = vadd.f32 %v495, %v496
  %v498 = vrot.slane %v497, 2
  %v499 = vadd.f32 %v497, %v498
  %v500 = vrot.slane %v499, 1
  %v501 = vadd.f32 %v499, %v500
  %v502 = vmul.f32 %v501, 0.125
  %503 = vst [vmem:[%s10] sm:$0xff] %v502
  // Predicated region
  $region42: #{nll_loss_pallas.1} parent=0 // pred_check
    _
  $region43: #{nll_loss_pallas.1} parent=0 // pred_check_branch
    %505 = sbr.rel (0) target = $region45
  $region44: #{nll_loss_pallas.1} parent=0 // pred_region
    _
  $region45: #{nll_loss_pallas.1} parent=0 // pred_fallthru
    _
  // Predicated region
  $region46: #{nll_loss_pallas.1} parent=0 // pred_check
    _
  $region47: #{nll_loss_pallas.1} parent=0 // pred_check_branch
    %507 = sbr.rel (0) target = $region49
  $region48: #{nll_loss_pallas.1} parent=0 // pred_region
    _
  $region49: #{nll_loss_pallas.1} parent=0 // pred_fallthru
    _

</llo_original>
